<compile_context>
chip_gen: v5e
topology: v5e:2x2
jax: 0.10.0
libtpu: 0.0.40
codegen_flags: <defaults>
</compile_context>

<pallas_src>
import jax
import jax.numpy as jnp
from jax.experimental import pallas as pl

LANE = 128
SUB = 8


def _rup(n, m):
    return ((n + m - 1) // m) * m


# ----------------------------- layout ----------------------------------------

def make_layout(layer_inputs, num_actions, hidden_states):
    """Static row/lane layout of the single packed weight slab."""
    n_layers = len(layer_inputs) - 1
    D, H = layer_inputs[-1], hidden_states
    widths8 = [_rup(w, SUB) for w in layer_inputs]   # activation widths (8-aligned)
    D8, H8 = widths8[-1], _rup(H, SUB)
    GW = _rup(H, LANE)                 # per-gate lane block (128-aligned slices)
    Ap = _rup(num_actions, LANE)       # policy-logit lane block
    HEAD_W = Ap + LANE                 # fused policy | value head width

    rows = {}
    r = 0
    for i in range(n_layers):
        rows[f"lin{i}"] = r
        r += widths8[i]
    rows["w_ih"] = r; r += D8
    rows["w_hh"] = r; r += H8
    rows["w_hx"] = r; r += D8
    rows["w_hy"] = r; r += H8
    bias_row0 = r
    r += _rup(n_layers + 3, SUB)       # lin biases, b_ih, b_hh, b_head

    C = _rup(max([3 * GW, HEAD_W] + widths8[1:]), LANE)
    return dict(n_layers=n_layers, D=D, H=H, D8=D8, H8=H8, GW=GW, Ap=Ap,
                HEAD_W=HEAD_W, widths8=widths8, rows=rows, bias_row0=bias_row0,
                total_rows=r, C=C, num_actions=num_actions)


# ----------------------------- fused Pallas kernel ---------------------------

def make_fused_kernel(L):
    n_layers, GW, Ap, HEAD_W = L["n_layers"], L["GW"], L["Ap"], L["HEAD_W"]
    D8, H8, widths8 = L["D8"], L["H8"], L["widths8"]
    rows, b0 = L["rows"], L["bias_row0"]
    bih_row = b0 + n_layers
    bhh_row = bih_row + 1
    bhd_row = bhh_row + 1
    f32 = jnp.float32

    def kernel(x_ref, h_ref, w_ref, out_ref, h_new_ref):
        # ---- MLP trunk: x = tanh(x @ W + b) --------------------------------
        x = x_ref[...]                                   # (B, widths8[0])
        for i in range(n_layers):
            r0 = rows[f"lin{i}"]
            k, n = widths8[i], widths8[i + 1]
            w = w_ref[r0:r0 + k, 0:n]                    # static slab carve
            b = w_ref[b0 + i:b0 + i + 1, 0:n]
            x = jnp.tanh(jnp.dot(x, w, preferred_element_type=f32) + b)

        # ---- single-step GRU cell (PyTorch gate order r, z, n) -------------
        h = h_ref[...]                                   # (B, H8)
        gi = (jnp.dot(x, w_ref[rows["w_ih"]:rows["w_ih"] + D8, 0:3 * GW],
                      preferred_element_type=f32)
              + w_ref[bih_row:bih_row + 1, 0:3 * GW])
        gh = (jnp.dot(h, w_ref[rows["w_hh"]:rows["w_hh"] + H8, 0:3 * GW],
                      preferred_element_type=f32)
              + w_ref[bhh_row:bhh_row + 1, 0:3 * GW])
        # 128-aligned gate slices (lane offsets 0, GW, 2*GW).
        r = jax.nn.sigmoid(gi[:, 0:H8] + gh[:, 0:H8])
        z = jax.nn.sigmoid(gi[:, GW:GW + H8] + gh[:, GW:GW + H8])
        n = jnp.tanh(gi[:, 2 * GW:2 * GW + H8] + r * gh[:, 2 * GW:2 * GW + H8])
        h_new = (1.0 - z) * n + z * h
        h_new_ref[...] = h_new                           # (no read of h after this)

        # ---- heads: concat([x, y]) fused via split weights ------------------
        y = jnp.tanh(h_new)
        head = (jnp.dot(x, w_ref[rows["w_hx"]:rows["w_hx"] + D8, 0:HEAD_W],
                        preferred_element_type=f32)
                + jnp.dot(y, w_ref[rows["w_hy"]:rows["w_hy"] + H8, 0:HEAD_W],
                          preferred_element_type=f32)
                + w_ref[bhd_row:bhd_row + 1, 0:HEAD_W])

        # Softmax over the policy lanes; padded action lanes carry a baked
        # -1e30 bias so they contribute exp(...) == 0 with no in-kernel mask.
        logits = head[:, 0:Ap]
        m = jnp.max(logits, axis=-1, keepdims=True)
        e = jnp.exp(logits - m)
        denom = jnp.sum(e, axis=-1, keepdims=True)
        out_ref[:, 0:Ap] = e / denom                     # exact division
        out_ref[:, Ap:HEAD_W] = head[:, Ap:HEAD_W]       # value slab (lane Ap)

    return kernel


# ----------------------------- parameters ------------------------------------

def init_params(key, layer_inputs, num_actions, hidden_states):
    """PyTorch-layout parameters (W: (out, in)), matching LinearNet init."""
    assert len(layer_inputs) > 1
    orth = jax.nn.initializers.orthogonal(scale=1.0)
    keys = jax.random.split(key, len(layer_inputs) + 2)

    linears = []
    for i in range(len(layer_inputs) - 1):
        w = orth(keys[i], (layer_inputs[i + 1], layer_inputs[i]), jnp.float32)
        b = jnp.zeros((layer_inputs[i + 1],), jnp.float32)
        linears.append((w, b))

    D, H = layer_inputs[-1], hidden_states
    k = 1.0 / jnp.sqrt(jnp.float32(H))
    kg1, kg2, kg3, kg4 = jax.random.split(keys[len(layer_inputs) - 1], 4)
    gru = {
        "w_ih": jax.random.uniform(kg1, (3 * H, D), jnp.float32, -k, k),
        "w_hh": jax.random.uniform(kg2, (3 * H, H), jnp.float32, -k, k),
        "b_ih": jax.random.uniform(kg3, (3 * H,), jnp.float32, -k, k),
        "b_hh": jax.random.uniform(kg4, (3 * H,), jnp.float32, -k, k),
    }

    F_cat = D + H
    value = (orth(keys[-2], (1, F_cat), jnp.float32), jnp.zeros((1,), jnp.float32))
    policy = (orth(keys[-1], (num_actions, F_cat), jnp.float32),
              jnp.zeros((num_actions,), jnp.float32))
    return {"linears": linears, "gru": gru, "value": value, "policy": policy}


def pack_params(params, layer_inputs, num_actions, hidden_states):
    """Pack every weight/bias into ONE contiguous lane-aligned f32 slab."""
    L = make_layout(layer_inputs, num_actions, hidden_states)
    D, H, GW, Ap = L["D"], L["H"], L["GW"], L["Ap"]
    n_layers, rows, b0 = L["n_layers"], L["rows"], L["bias_row0"]

    slab = jnp.zeros((L["total_rows"], L["C"]), jnp.float32)

    # MLP linears (stored transposed: (in, out)).
    for i, (w, b) in enumerate(params["linears"]):
        din, dout = layer_inputs[i], layer_inputs[i + 1]
        r0 = rows[f"lin{i}"]
        slab = slab.at[r0:r0 + din, 0:dout].set(w.T)
        slab = slab.at[b0 + i, 0:dout].set(b)

    # GRU gates (r, z, n) fused along lanes, 128 lanes per gate.
    g = params["gru"]
    for gi in range(3):
        c0 = gi * GW
        slab = slab.at[rows["w_ih"]:rows["w_ih"] + D, c0:c0 + H].set(
            g["w_ih"][gi * H:(gi + 1) * H, :].T)
        slab = slab.at[rows["w_hh"]:rows["w_hh"] + H, c0:c0 + H].set(
            g["w_hh"][gi * H:(gi + 1) * H, :].T)
        slab = slab.at[b0 + n_layers, c0:c0 + H].set(g["b_ih"][gi * H:(gi + 1) * H])
        slab = slab.at[b0 + n_layers + 1, c0:c0 + H].set(g["b_hh"][gi * H:(gi + 1) * H])

    # Fused policy|value heads, split into x-part and y-part (fused concat).
    wp, bp = params["policy"]
    wv, bv = params["value"]
    slab = slab.at[rows["w_hx"]:rows["w_hx"] + D, 0:num_actions].set(wp[:, :D].T)
    slab = slab.at[rows["w_hx"]:rows["w_hx"] + D, Ap].set(wv[0, :D])
    slab = slab.at[rows["w_hy"]:rows["w_hy"] + H, 0:num_actions].set(wp[:, D:].T)
    slab = slab.at[rows["w_hy"]:rows["w_hy"] + H, Ap].set(wv[0, D:])
    bhd = b0 + n_layers + 2
    slab = slab.at[bhd, 0:num_actions].set(bp)
    slab = slab.at[bhd, num_actions:Ap].set(-1e30)    # baked softmax mask
    slab = slab.at[bhd, Ap].set(bv[0])
    return slab


# ----------------------------- forward ---------------------------------------

def make_forward(layer_inputs, num_actions, hidden_states):
    L = make_layout(layer_inputs, num_actions, hidden_states)
    D0, H = layer_inputs[0], hidden_states
    D0_8, H8, Ap, HEAD_W = L["widths8"][0], L["H8"], L["Ap"], L["HEAD_W"]
    kernel = make_fused_kernel(L)

    @jax.jit
    def forward(slab, x, hidden_state):
        """x: (B, layer_inputs[0]); hidden_state: (1, B, H) (PyTorch GRU conv.).
        Returns (softmax probs (B, A), value (B,), new_hidden_state (1, B, H))."""
        B = x.shape[0]
        x_pad = jnp.pad(x, ((0, 0), (0, D0_8 - D0)))
        h_pad = jnp.pad(hidden_state[0], ((0, 0), (0, H8 - H)))

        head_out, h_new = pl.pallas_call(
            kernel,
            out_shape=(
                jax.ShapeDtypeStruct((B, HEAD_W), jnp.float32),  # probs | value slab
                jax.ShapeDtypeStruct((B, H8), jnp.float32),      # new hidden
            ),
            input_output_aliases={1: 1},   # hidden-state buffer reused for h_new
        )(x_pad, h_pad, slab)

        probs = head_out[:, :num_actions]
        value = head_out[:, Ap]
        new_hidden = h_new[:, :H][None, :, :]
        return probs, value, new_hidden

    return forward


# ----------------------------- pure-JAX reference ----------------------------

def reference_forward(params, x, hidden_state):
    for (w, b) in params["linears"]:
        x = jnp.tanh(x @ w.T + b)
    h = hidden_state[0]
    g = params["gru"]
    H = h.shape[-1]
    gi = x @ g["w_ih"].T + g["b_ih"]
    gh = h @ g["w_hh"].T + g["b_hh"]
    i_r, i_z, i_n = gi[:, :H], gi[:, H:2 * H], gi[:, 2 * H:]
    h_r, h_z, h_n = gh[:, :H], gh[:, H:2 * H], gh[:, 2 * H:]
    r = jax.nn.sigmoid(i_r + h_r)
    z = jax.nn.sigmoid(i_z + h_z)
    n = jnp.tanh(i_n + r * h_n)
    h_new = (1.0 - z) * n + z * h
    y = jnp.tanh(h_new)
    xc = jnp.concatenate([x, y], axis=1)
    wp, bp = params["policy"]
    wv, bv = params["value"]
    probs = jax.nn.softmax(xc @ wp.T + bp, axis=-1)
    value = (xc @ wv.T + bv).reshape(-1)
    return probs, value, h_new[None, :, :]


# ----------------------------- main -------------------------------------------

if __name__ == "__main__":
    layer_inputs = [16, 32, 32]
    num_actions = 4
    hidden_states = 32
    batch = 8

    key = jax.random.PRNGKey(0)
    k_param, k_x, k_h = jax.random.split(key, 3)

    params = init_params(k_param, layer_inputs, num_actions, hidden_states)
    slab = pack_params(params, layer_inputs, num_actions, hidden_states)
    forward = make_forward(layer_inputs, num_actions, hidden_states)

    x = jax.random.normal(k_x, (batch, layer_inputs[0]), jnp.float32)
    hidden_state = jax.random.normal(k_h, (1, batch, hidden_states), jnp.float32)

    probs, value, new_hidden = forward(slab, x, hidden_state)
    jax.block_until_ready((probs, value, new_hidden))

    assert probs.shape == (batch, num_actions)
    assert value.shape == (batch,)
    assert new_hidden.shape == (1, batch, hidden_states)

    # Sanity vs. pure-JAX reference (MXU matmul precision gives small diffs;
    # structural bugs would be O(1)).
    p_ref, v_ref, h_ref = reference_forward(params, x, hidden_state)
    assert jnp.allclose(jnp.sum(probs, axis=-1), 1.0, atol=1e-3)
    assert jnp.allclose(probs, p_ref, atol=1e-2, rtol=1e-2)
    assert jnp.allclose(value, v_ref, atol=2e-2, rtol=2e-2)
    assert jnp.allclose(new_hidden, h_ref, atol=2e-2, rtol=2e-2)

    print("KERNEL_OK")
</pallas_src>

<mosaic_0001>
module attributes {stable_mosaic.version = 11 : i64} {
  func.func @kernel(%arg0: memref<8x16xf32, #tpu.memory_space<vmem>>, %arg1: memref<8x32xf32, #tpu.memory_space<vmem>>, %arg2: memref<184x384xf32, #tpu.memory_space<vmem>>, %arg3: memref<8x256xf32, #tpu.memory_space<vmem>>, %arg4: memref<8x32xf32, #tpu.memory_space<vmem>>) attributes {dimension_semantics = [], scalar_prefetch = 0 : i64, scratch_operands = 0 : i64, tpu.core_type = #tpu.core_type<tc>} {
    %c0 = arith.constant 0 : index
    %c0_0 = arith.constant 0 : index
    %0 = vector.load %arg0[%c0, %c0_0] : memref<8x16xf32, #tpu.memory_space<vmem>>, vector<8x16xf32>
    %c0_1 = arith.constant 0 : index
    %c0_2 = arith.constant 0 : index
    %1 = vector.load %arg2[%c0_1, %c0_2] : memref<184x384xf32, #tpu.memory_space<vmem>>, vector<16x32xf32>
    %c176 = arith.constant 176 : index
    %c0_3 = arith.constant 0 : index
    %2 = vector.load %arg2[%c176, %c0_3] : memref<184x384xf32, #tpu.memory_space<vmem>>, vector<1x32xf32>
    %cst = arith.constant dense<0.000000e+00> : vector<8x32xf32>
    %3 = tpu.matmul %0, %1, %cst {dimension_numbers = #tpu.dot_dimension_numbers<[1], [0], [0], [1], [0, 0, 1, 1], [], []>} : vector<8x16xf32>, vector<16x32xf32>, vector<8x32xf32> -> vector<8x32xf32>
    %4 = vector.broadcast %2 : vector<1x32xf32> to vector<8x32xf32>
    %5 = arith.addf %3, %4 : vector<8x32xf32>
    %6 = math.tanh %5 : vector<8x32xf32>
    %c16 = arith.constant 16 : index
    %c0_4 = arith.constant 0 : index
    %7 = vector.load %arg2[%c16, %c0_4] : memref<184x384xf32, #tpu.memory_space<vmem>>, vector<32x32xf32>
    %c177 = arith.constant 177 : index
    %c0_5 = arith.constant 0 : index
    %8 = vector.load %arg2[%c177, %c0_5] : memref<184x384xf32, #tpu.memory_space<vmem>>, vector<1x32xf32>
    %cst_6 = arith.constant dense<0.000000e+00> : vector<8x32xf32>
    %9 = tpu.matmul %6, %7, %cst_6 {dimension_numbers = #tpu.dot_dimension_numbers<[1], [0], [0], [1], [0, 0, 1, 1], [], []>} : vector<8x32xf32>, vector<32x32xf32>, vector<8x32xf32> -> vector<8x32xf32>
    %10 = vector.broadcast %8 : vector<1x32xf32> to vector<8x32xf32>
    %11 = arith.addf %9, %10 : vector<8x32xf32>
    %12 = math.tanh %11 : vector<8x32xf32>
    %c0_7 = arith.constant 0 : index
    %c0_8 = arith.constant 0 : index
    %13 = vector.load %arg1[%c0_7, %c0_8] : memref<8x32xf32, #tpu.memory_space<vmem>>, vector<8x32xf32>
    %c48 = arith.constant 48 : index
    %c0_9 = arith.constant 0 : index
    %14 = vector.load %arg2[%c48, %c0_9] : memref<184x384xf32, #tpu.memory_space<vmem>>, vector<32x384xf32>
    %cst_10 = arith.constant dense<0.000000e+00> : vector<8x384xf32>
    %15 = tpu.matmul %12, %14, %cst_10 {dimension_numbers = #tpu.dot_dimension_numbers<[1], [0], [0], [1], [0, 0, 1, 1], [], []>} : vector<8x32xf32>, vector<32x384xf32>, vector<8x384xf32> -> vector<8x384xf32>
    %c178 = arith.constant 178 : index
    %c0_11 = arith.constant 0 : index
    %16 = vector.load %arg2[%c178, %c0_11] : memref<184x384xf32, #tpu.memory_space<vmem>>, vector<1x384xf32>
    %17 = vector.broadcast %16 : vector<1x384xf32> to vector<8x384xf32>
    %18 = arith.addf %15, %17 : vector<8x384xf32>
    %c80 = arith.constant 80 : index
    %c0_12 = arith.constant 0 : index
    %19 = vector.load %arg2[%c80, %c0_12] : memref<184x384xf32, #tpu.memory_space<vmem>>, vector<32x384xf32>
    %cst_13 = arith.constant dense<0.000000e+00> : vector<8x384xf32>
    %20 = tpu.matmul %13, %19, %cst_13 {dimension_numbers = #tpu.dot_dimension_numbers<[1], [0], [0], [1], [0, 0, 1, 1], [], []>} : vector<8x32xf32>, vector<32x384xf32>, vector<8x384xf32> -> vector<8x384xf32>
    %c179 = arith.constant 179 : index
    %c0_14 = arith.constant 0 : index
    %21 = vector.load %arg2[%c179, %c0_14] : memref<184x384xf32, #tpu.memory_space<vmem>>, vector<1x384xf32>
    %22 = vector.broadcast %21 : vector<1x384xf32> to vector<8x384xf32>
    %23 = arith.addf %20, %22 : vector<8x384xf32>
    %24 = vector.extract_strided_slice %18 {offsets = [0, 0], sizes = [8, 32], strides = [1, 1]} : vector<8x384xf32> to vector<8x32xf32>
    %25 = vector.extract_strided_slice %23 {offsets = [0, 0], sizes = [8, 32], strides = [1, 1]} : vector<8x384xf32> to vector<8x32xf32>
    %26 = arith.addf %24, %25 : vector<8x32xf32>
    %27 = arith.negf %26 : vector<8x32xf32>
    %28 = math.exp %27 : vector<8x32xf32>
    %cst_15 = arith.constant 1.000000e+00 : f32
    %29 = vector.broadcast %cst_15 : f32 to vector<8x32xf32>
    %30 = arith.addf %29, %28 : vector<8x32xf32>
    %31 = arith.divf %29, %30 : vector<8x32xf32>
    %32 = vector.extract_strided_slice %18 {offsets = [0, 128], sizes = [8, 32], strides = [1, 1]} : vector<8x384xf32> to vector<8x32xf32>
    %33 = vector.extract_strided_slice %23 {offsets = [0, 128], sizes = [8, 32], strides = [1, 1]} : vector<8x384xf32> to vector<8x32xf32>
    %34 = arith.addf %32, %33 : vector<8x32xf32>
    %35 = arith.negf %34 : vector<8x32xf32>
    %36 = math.exp %35 : vector<8x32xf32>
    %cst_16 = arith.constant 1.000000e+00 : f32
    %37 = vector.broadcast %cst_16 : f32 to vector<8x32xf32>
    %38 = arith.addf %37, %36 : vector<8x32xf32>
    %39 = arith.divf %37, %38 : vector<8x32xf32>
    %40 = vector.extract_strided_slice %18 {offsets = [0, 256], sizes = [8, 32], strides = [1, 1]} : vector<8x384xf32> to vector<8x32xf32>
    %41 = vector.extract_strided_slice %23 {offsets = [0, 256], sizes = [8, 32], strides = [1, 1]} : vector<8x384xf32> to vector<8x32xf32>
    %42 = arith.mulf %31, %41 : vector<8x32xf32>
    %43 = arith.addf %40, %42 : vector<8x32xf32>
    %44 = math.tanh %43 : vector<8x32xf32>
    %cst_17 = arith.constant 1.000000e+00 : f32
    %45 = vector.broadcast %cst_17 : f32 to vector<8x32xf32>
    %46 = arith.subf %45, %39 : vector<8x32xf32>
    %47 = arith.mulf %46, %44 : vector<8x32xf32>
    %48 = arith.mulf %39, %13 : vector<8x32xf32>
    %49 = arith.addf %47, %48 : vector<8x32xf32>
    %c0_18 = arith.constant 0 : index
    %c0_19 = arith.constant 0 : index
    %50 = vector.load %arg4[%c0_18, %c0_19] : memref<8x32xf32, #tpu.memory_space<vmem>>, vector<8x32xf32>
    tpu.vector_store %arg4[%c0_18, %c0_19], %49 {strides = array<i32>} : memref<8x32xf32, #tpu.memory_space<vmem>>, vector<8x32xf32>,
    %51 = math.tanh %49 : vector<8x32xf32>
    %c112 = arith.constant 112 : index
    %c0_20 = arith.constant 0 : index
    %52 = vector.load %arg2[%c112, %c0_20] : memref<184x384xf32, #tpu.memory_space<vmem>>, vector<32x256xf32>
    %cst_21 = arith.constant dense<0.000000e+00> : vector<8x256xf32>
    %53 = tpu.matmul %12, %52, %cst_21 {dimension_numbers = #tpu.dot_dimension_numbers<[1], [0], [0], [1], [0, 0, 1, 1], [], []>} : vector<8x32xf32>, vector<32x256xf32>, vector<8x256xf32> -> vector<8x256xf32>
    %c144 = arith.constant 144 : index
    %c0_22 = arith.constant 0 : index
    %54 = vector.load %arg2[%c144, %c0_22] : memref<184x384xf32, #tpu.memory_space<vmem>>, vector<32x256xf32>
    %cst_23 = arith.constant dense<0.000000e+00> : vector<8x256xf32>
    %55 = tpu.matmul %51, %54, %cst_23 {dimension_numbers = #tpu.dot_dimension_numbers<[1], [0], [0], [1], [0, 0, 1, 1], [], []>} : vector<8x32xf32>, vector<32x256xf32>, vector<8x256xf32> -> vector<8x256xf32>
    %56 = arith.addf %53, %55 : vector<8x256xf32>
    %c180 = arith.constant 180 : index
    %c0_24 = arith.constant 0 : index
    %57 = vector.load %arg2[%c180, %c0_24] : memref<184x384xf32, #tpu.memory_space<vmem>>, vector<1x256xf32>
    %58 = vector.broadcast %57 : vector<1x256xf32> to vector<8x256xf32>
    %59 = arith.addf %56, %58 : vector<8x256xf32>
    %60 = vector.extract_strided_slice %59 {offsets = [0, 0], sizes = [8, 128], strides = [1, 1]} : vector<8x256xf32> to vector<8x128xf32>
    %cst_25 = arith.constant dense<0xFF800000> : vector<8xf32>
    %61 = vector.multi_reduction <maximumf>, %60, %cst_25 [1] : vector<8x128xf32> to vector<8xf32>
    %62 = vector.shape_cast %61 : vector<8xf32> to vector<8x1xf32>
    %63 = vector.broadcast %62 : vector<8x1xf32> to vector<8x128xf32>
    %64 = arith.subf %60, %63 : vector<8x128xf32>
    %65 = math.exp %64 : vector<8x128xf32>
    %cst_26 = arith.constant dense<0.000000e+00> : vector<8xf32>
    %66 = vector.multi_reduction <add>, %65, %cst_26 [1] : vector<8x128xf32> to vector<8xf32>
    %67 = vector.shape_cast %66 : vector<8xf32> to vector<8x1xf32>
    %68 = vector.broadcast %67 : vector<8x1xf32> to vector<8x128xf32>
    %69 = arith.divf %65, %68 : vector<8x128xf32>
    %c0_27 = arith.constant 0 : index
    %c0_28 = arith.constant 0 : index
    %70 = vector.load %arg3[%c0_27, %c0_28] : memref<8x256xf32, #tpu.memory_space<vmem>>, vector<8x128xf32>
    tpu.vector_store %arg3[%c0_27, %c0_28], %69 {strides = array<i32>} : memref<8x256xf32, #tpu.memory_space<vmem>>, vector<8x128xf32>,
    %71 = vector.extract_strided_slice %59 {offsets = [0, 128], sizes = [8, 128], strides = [1, 1]} : vector<8x256xf32> to vector<8x128xf32>
    %c0_29 = arith.constant 0 : index
    %c128 = arith.constant 128 : index
    %72 = vector.load %arg3[%c0_29, %c128] : memref<8x256xf32, #tpu.memory_space<vmem>>, vector<8x128xf32>
    tpu.vector_store %arg3[%c0_29, %c128], %71 {strides = array<i32>} : memref<8x256xf32, #tpu.memory_space<vmem>>, vector<8x128xf32>,
    return
  }
}

</mosaic_0001>

<llo_original>
// kernel: forward.1
$region0: #{forward.1}
  #allocation0 [shape = 'u32[]', space=smem, size = 0x4, offset = 0x4, fixed_abs, tag = 'smem constant byte address 0x4 - core index']
  #allocation1 [shape = 'u32[72,128]{1,0:T(1,128)}', space=vmem, size = 0x9000, scoped, tag = 'internal scratch']
  %s0 = inlined_call_operand.vmem [shape: f32[8,16], index: 0, kind: input, shape index: {}]
  %s1 = inlined_call_operand.vmem [shape: f32[8,32], index: 1, kind: input, shape index: {}, may-alias: {1,4}]
  %s2 = inlined_call_operand.hbm [shape: f32[184,384], index: 2, kind: input, shape index: {}]
  %s3 = inlined_call_operand.vmem [shape: f32[8,256], index: 3, kind: output, shape index: {0}]
  %s4 = inlined_call_operand.vmem [shape: f32[8,32], index: 4, kind: output, shape index: {1}, may-alias: {1,4}]
  %5 = xla_tuple %s3, %s4
  %s6 = sld [smem:[#allocation0]]
  $region34: #{forward.1} parent=0
    _
  %s8 = ssub.s32 1, %s6
  %s9 = scalar_select 0, %s8, %s6
  $region1: #{forward.1} parent=0
    #allocation2 [shape = 'u8[282624]{0}', space=vmem, size = 0x45000, scoped, tag = 'input window, operand 2, single buffered']
    #allocation3 [shape = 's32[1]{0}', space=sflag, size = 0x4, scoped, tag = 'scoped memory for forward.1']
    %10 = vsyncpa [#allocation3], 0
    // Predicated region
    $region2: #{forward.1} parent=1 // pred_check
      _
    $region3: #{forward.1} parent=1 // pred_check_branch
      %12 = sbr.rel (0) target = $region5
    $region4: #{forward.1} parent=1 // pred_region
      _
    $region5: #{forward.1} parent=1 // pred_fallthru
      _
    // Predicated region
    $region6: #{forward.1} parent=1 // pred_check
      _
    $region7: #{forward.1} parent=1 // pred_check_branch
      %14 = sbr.rel (0) target = $region9
    $region8: #{forward.1} parent=1 // pred_region
      _
    $region9: #{forward.1} parent=1 // pred_fallthru
      _
    // Predicated region
    $region10: #{forward.1} parent=1 // pred_check
      _
    $region11: #{forward.1} parent=1 // pred_check_branch
      %16 = sbr.rel (0) target = $region13
    $region12: #{forward.1} parent=1 // pred_region
      %18 = vsyncadd [#allocation3], 0
      %s19 = sshll.u32 %s2, 4
      %s20 = int_to_ptr.hbm [resolvable:$true] %s19
      %s21 = sshll.u32 [#allocation2], 4
      %s22 = int_to_ptr.vmem [resolvable:$true] %s21
      %27 = dma.hbm_to_vmem [thread:$0]  %s20, 8832, %s22, [#allocation3], 384, 384, 24
    $region13: #{forward.1} parent=1 // pred_fallthru
      _
    // Predicated region
    $region14: #{forward.1} parent=1 // pred_check
      _
    $region15: #{forward.1} parent=1 // pred_check_branch
      %29 = sbr.rel (0) target = $region17
    $region16: #{forward.1} parent=1 // pred_region
      %31 = dma.done [#allocation3], 8832
    $region17: #{forward.1} parent=1 // pred_fallthru
      _
    %v32 = vld [vmem:[%s0] sm:$0xff]
    %v33 = vld [vmem:[#allocation2] sm:$0xff]
    %v34 = vld [vmem:[#allocation2 + $0x18] sm:$0xff]
    %v35 = vld [vmem:[#allocation2 + $0x210] ss:$0 sm:$0xff]
    %vm36 = vcmask 130048
    %v38 = vsel %vm36, %v32, 0
    %40 = vmatpush.msra.mxu0 0.0
    %41 = vmatpush.msra.mxu0 0.0
    %42 = vmatpush.msra.mxu0 0.0
    %43 = vmatpush.msra.mxu0 0.0
    %44 = vmatpush.msra.mxu0 0.0
    %45 = vmatpush.msra.mxu0 0.0
    %46 = vmatpush.msra.mxu0 0.0
    %47 = vmatpush.msra.mxu0 0.0
    %48 = vmatpush.msra.mxu0 0.0
    %49 = vmatpush.msra.mxu0 0.0
    %50 = vmatpush.msra.mxu0 0.0
    %51 = vmatpush.msra.mxu0 0.0
    %52 = vmatpush.msra.mxu0 0.0
    %53 = vmatpush.msra.mxu0 0.0
    %54 = vmatpush.msra.mxu0 %v34
    %55 = vmatpush.msra.mxu0 %v33
    %56 = vmatmul.f32.gmra.mxu0 %v38
    %v57 = vpop.f32.mrf.mxu0
    %v58 = vadd.f32 %v35, %v57
    %59 = vdwg.mxu0
    %v60 = vtanh.pop %v58
    %v61 = vld [vmem:[#allocation2 + $0x30] sm:$0xff]
    %v62 = vld [vmem:[#allocation2 + $0x48] sm:$0xff]
    %v63 = vld [vmem:[#allocation2 + $0x60] sm:$0xff]
    %v64 = vld [vmem:[#allocation2 + $0x78] sm:$0xff]
    %v65 = vld [vmem:[#allocation2 + $0x211] ss:$0 sm:$0xff]
    %vm66 = vcmask 261120
    %v68 = vsel %vm66, %v60, 0
    %70 = vmatpush.msra.mxu0 0.0
    %71 = vmatpush.msra.mxu0 0.0
    %72 = vmatpush.msra.mxu0 0.0
    %73 = vmatpush.msra.mxu0 0.0
    %74 = vmatpush.msra.mxu0 0.0
    %75 = vmatpush.msra.mxu0 0.0
    %76 = vmatpush.msra.mxu0 0.0
    %77 = vmatpush.msra.mxu0 0.0
    %78 = vmatpush.msra.mxu0 0.0
    %79 = vmatpush.msra.mxu0 0.0
    %80 = vmatpush.msra.mxu0 0.0
    %81 = vmatpush.msra.mxu0 0.0
    %82 = vmatpush.msra.mxu0 %v64
    %83 = vmatpush.msra.mxu0 %v63
    %84 = vmatpush.msra.mxu0 %v62
    %85 = vmatpush.msra.mxu0 %v61
    %86 = vmatmul.f32.gmra.mxu0 %v68
    %v87 = vpop.f32.mrf.mxu0
    %v88 = vadd.f32 %v65, %v87
    %89 = vdwg.mxu0
    %v90 = vtanh.pop %v88
    %v91 = vld [vmem:[%s1] sm:$0xff]
    %v92 = vld [vmem:[#allocation2 + $0x90] sm:$0xff]
    %v93 = vld [vmem:[#allocation2 + $0x98] sm:$0xff]
    %v94 = vld [vmem:[#allocation2 + $0xa0] sm:$0xff]
    %v95 = vld [vmem:[#allocation2 + $0xa8] sm:$0xff]
    %v96 = vld [vmem:[#allocation2 + $0xb0] sm:$0xff]
    %v97 = vld [vmem:[#allocation2 + $0xb8] sm:$0xff]
    %v98 = vld [vmem:[#allocation2 + $0xc0] sm:$0xff]
    %v99 = vld [vmem:[#allocation2 + $0xc8] sm:$0xff]
    %v100 = vld [vmem:[#allocation2 + $0xd0] sm:$0xff]
    %v101 = vld [vmem:[#allocation2 + $0xd8] sm:$0xff]
    %v102 = vld [vmem:[#allocation2 + $0xe0] sm:$0xff]
    %v103 = vld [vmem:[#allocation2 + $0xe8] sm:$0xff]
    %s104 = scalar_lea.vmem [#allocation2], 530
    %v105 = vld [vmem:[%s104] ss:$8 sm:$0x7]
    %v107 = vperm.slane %v105, 0
    %v108 = vperm.slane %v105, 1
    %v109 = vperm.slane %v105, 2
    %v114 = vsel %vm66, %v90, 0
    %116 = vmatpush.msra.mxu0 0.0
    %117 = vmatpush.msra.mxu0 0.0
    %118 = vmatpush.msra.mxu0 0.0
    %119 = vmatpush.msra.mxu0 0.0
    %120 = vmatpush.msra.mxu0 0.0
    %121 = vmatpush.msra.mxu0 0.0
    %122 = vmatpush.msra.mxu0 0.0
    %123 = vmatpush.msra.mxu0 0.0
    %124 = vmatpush.msra.mxu0 0.0
    %125 = vmatpush.msra.mxu0 0.0
    %126 = vmatpush.msra.mxu0 0.0
    %127 = vmatpush.msra.mxu0 0.0
    %128 = vmatpush.msra.mxu0 %v101
    %129 = vmatpush.msra.mxu0 %v98
    %130 = vmatpush.msra.mxu0 %v95
    %131 = vmatpush.msra.mxu0 %v92
    %132 = vmatmul.f32.gmra.mxu0 %v114
    %v133 = vpop.f32.mrf.mxu0
    %v134 = vadd.f32 %v107, %v133
    %135 = vdwg.mxu0
    %136 = vmatpush.msra.mxu0 0.0
    %137 = vmatpush.msra.mxu0 0.0
    %138 = vmatpush.msra.mxu0 0.0
    %139 = vmatpush.msra.mxu0 0.0
    %140 = vmatpush.msra.mxu0 0.0
    %141 = vmatpush.msra.mxu0 0.0
    %142 = vmatpush.msra.mxu0 0.0
    %143 = vmatpush.msra.mxu0 0.0
    %144 = vmatpush.msra.mxu0 0.0
    %145 = vmatpush.msra.mxu0 0.0
    %146 = vmatpush.msra.mxu0 0.0
    %147 = vmatpush.msra.mxu0 0.0
    %148 = vmatpush.msra.mxu0 %v102
    %149 = vmatpush.msra.mxu0 %v99
    %150 = vmatpush.msra.mxu0 %v96
    %151 = vmatpush.msra.mxu0 %v93
    %152 = vmatmul.f32.gmra.mxu0 %v114
    %v153 = vpop.f32.mrf.mxu0
    %v154 = vadd.f32 %v108, %v153
    %155 = vdwg.mxu0
    %156 = vmatpush.msra.mxu0 0.0
    %157 = vmatpush.msra.mxu0 0.0
    %158 = vmatpush.msra.mxu0 0.0
    %159 = vmatpush.msra.mxu0 0.0
    %160 = vmatpush.msra.mxu0 0.0
    %161 = vmatpush.msra.mxu0 0.0
    %162 = vmatpush.msra.mxu0 0.0
    %163 = vmatpush.msra.mxu0 0.0
    %164 = vmatpush.msra.mxu0 0.0
    %165 = vmatpush.msra.mxu0 0.0
    %166 = vmatpush.msra.mxu0 0.0
    %167 = vmatpush.msra.mxu0 0.0
    %168 = vmatpush.msra.mxu0 %v103
    %169 = vmatpush.msra.mxu0 %v100
    %170 = vmatpush.msra.mxu0 %v97
    %171 = vmatpush.msra.mxu0 %v94
    %172 = vmatmul.f32.gmra.mxu0 %v114
    %v173 = vpop.f32.mrf.mxu0
    %v174 = vadd.f32 %v109, %v173
    %175 = vdwg.mxu0
    %v176 = vld [vmem:[#allocation2 + $0xf0] sm:$0xff]
    %v177 = vld [vmem:[#allocation2 + $0xf8] sm:$0xff]
    %v178 = vld [vmem:[#allocation2 + $0x100] sm:$0xff]
    %v179 = vld [vmem:[#allocation2 + $0x108] sm:$0xff]
    %v180 = vld [vmem:[#allocation2 + $0x110] sm:$0xff]
    %v181 = vld [vmem:[#allocation2 + $0x118] sm:$0xff]
    %v182 = vld [vmem:[#allocation2 + $0x120] sm:$0xff]
    %v183 = vld [vmem:[#allocation2 + $0x128] sm:$0xff]
    %v184 = vld [vmem:[#allocation2 + $0x130] sm:$0xff]
    %v185 = vld [vmem:[#allocation2 + $0x138] sm:$0xff]
    %v186 = vld [vmem:[#allocation2 + $0x140] sm:$0xff]
    %v187 = vld [vmem:[#allocation2 + $0x148] sm:$0xff]
    %s188 = scalar_lea.vmem [#allocation2], 531
    %v189 = vld [vmem:[%s188] ss:$8 sm:$0x7]
    %v191 = vperm.slane %v189, 0
    %v192 = vperm.slane %v189, 1
    %v193 = vperm.slane %v189, 2
    %v198 = vsel %vm66, %v91, 0
    %200 = vmatpush.msra.mxu0 0.0
    %201 = vmatpush.msra.mxu0 0.0
    %202 = vmatpush.msra.mxu0 0.0
    %203 = vmatpush.msra.mxu0 0.0
    %204 = vmatpush.msra.mxu0 0.0
    %205 = vmatpush.msra.mxu0 0.0
    %206 = vmatpush.msra.mxu0 0.0
    %207 = vmatpush.msra.mxu0 0.0
    %208 = vmatpush.msra.mxu0 0.0
    %209 = vmatpush.msra.mxu0 0.0
    %210 = vmatpush.msra.mxu0 0.0
    %211 = vmatpush.msra.mxu0 0.0
    %212 = vmatpush.msra.mxu0 %v185
    %213 = vmatpush.msra.mxu0 %v182
    %214 = vmatpush.msra.mxu0 %v179
    %215 = vmatpush.msra.mxu0 %v176
    %216 = vmatmul.f32.gmra.mxu0 %v198
    %v217 = vpop.f32.mrf.mxu0
    %v218 = vadd.f32 %v191, %v217
    %219 = vdwg.mxu0
    %220 = vmatpush.msra.mxu0 0.0
    %221 = vmatpush.msra.mxu0 0.0
    %222 = vmatpush.msra.mxu0 0.0
    %223 = vmatpush.msra.mxu0 0.0
    %224 = vmatpush.msra.mxu0 0.0
    %225 = vmatpush.msra.mxu0 0.0
    %226 = vmatpush.msra.mxu0 0.0
    %227 = vmatpush.msra.mxu0 0.0
    %228 = vmatpush.msra.mxu0 0.0
    %229 = vmatpush.msra.mxu0 0.0
    %230 = vmatpush.msra.mxu0 0.0
    %231 = vmatpush.msra.mxu0 0.0
    %232 = vmatpush.msra.mxu0 %v186
    %233 = vmatpush.msra.mxu0 %v183
    %234 = vmatpush.msra.mxu0 %v180
    %235 = vmatpush.msra.mxu0 %v177
    %236 = vmatmul.f32.gmra.mxu0 %v198
    %v237 = vpop.f32.mrf.mxu0
    %v238 = vadd.f32 %v192, %v237
    %239 = vdwg.mxu0
    %240 = vmatpush.msra.mxu0 0.0
    %241 = vmatpush.msra.mxu0 0.0
    %242 = vmatpush.msra.mxu0 0.0
    %243 = vmatpush.msra.mxu0 0.0
    %244 = vmatpush.msra.mxu0 0.0
    %245 = vmatpush.msra.mxu0 0.0
    %246 = vmatpush.msra.mxu0 0.0
    %247 = vmatpush.msra.mxu0 0.0
    %248 = vmatpush.msra.mxu0 0.0
    %249 = vmatpush.msra.mxu0 0.0
    %250 = vmatpush.msra.mxu0 0.0
    %251 = vmatpush.msra.mxu0 0.0
    %252 = vmatpush.msra.mxu0 %v187
    %253 = vmatpush.msra.mxu0 %v184
    %254 = vmatpush.msra.mxu0 %v181
    %255 = vmatpush.msra.mxu0 %v178
    %256 = vmatmul.f32.gmra.mxu0 %v198
    %v257 = vpop.f32.mrf.mxu0
    %v258 = vadd.f32 %v193, %v257
    %259 = vdwg.mxu0
    %v260 = vadd.f32 %v134, %v218
    %v261 = vxor.u32 %v260, 2147483648
    %v262 = vmul.f32 %v261, 1.442695
    %v263 = vpow.pop %v262
    %v264 = vadd.f32 %v263, 1.0
    %v265 = vrcp.pop %v264
    %v266 = vmul.f32 %v264, %v265
    %v267 = vsub.f32 1.0, %v266
    %v268 = vmul.f32 %v265, %v267
    %v269 = vadd.f32 %v265, %v268
    %vm270 = vweird.f32 %v264
    %vm271 = vweird.f32 %v265
    %vm272 = vmor %vm270, %vm271
    %v273 = vsel %vm272, %v265, %v269
    %v274 = vand.u32 2147483647, %v264
    %vm275 = vcmp.eq.f32.partialorder %v274, 8.507059e+37
    %v276 = vand.u32 %v264, 2147483648
    %v277 = vor.u32 1.1754944e-38, %v276
    %v278 = vsel %vm275, %v277, %v273
    %v279 = vmul.f32 1.0, %v278
    %v280 = vadd.f32 %v154, %v238
    %v281 = vxor.u32 %v280, 2147483648
    %v282 = vmul.f32 %v281, 1.442695
    %v283 = vpow.pop %v282
    %v284 = vadd.f32 %v283, 1.0
    %v285 = vrcp.pop %v284
    %v286 = vmul.f32 %v284, %v285
    %v287 = vsub.f32 1.0, %v286
    %v288 = vmul.f32 %v285, %v287
    %v289 = vadd.f32 %v285, %v288
    %vm290 = vweird.f32 %v284
    %vm291 = vweird.f32 %v285
    %vm292 = vmor %vm290, %vm291
    %v293 = vsel %vm292, %v285, %v289
    %v294 = vand.u32 2147483647, %v284
    %vm295 = vcmp.eq.f32.partialorder %v294, 8.507059e+37
    %v296 = vand.u32 %v284, 2147483648
    %v297 = vor.u32 1.1754944e-38, %v296
    %v298 = vsel %vm295, %v297, %v293
    %v299 = vmul.f32 1.0, %v298
    %v300 = vmul.f32 %v279, %v258
    %v301 = vadd.f32 %v174, %v300
    %v302 = vtanh.pop %v301
    %v303 = vsub.f32 1.0, %v299
    %v304 = vmul.f32 %v303, %v302
    %v305 = vmul.f32 %v299, %v91
    %v306 = vadd.f32 %v304, %v305
    %307 = vst.msk [vmem:[%s4] sm:$0xff] %vm66, %v306
    %v308 = vtanh.pop %v306
    %v309 = vld [vmem:[#allocation2 + $0x150] sm:$0xff]
    %v310 = vld [vmem:[#allocation2 + $0x158] sm:$0xff]
    %v311 = vld [vmem:[#allocation2 + $0x168] sm:$0xff]
    %v312 = vld [vmem:[#allocation2 + $0x170] sm:$0xff]
    %v313 = vld [vmem:[#allocation2 + $0x180] sm:$0xff]
    %v314 = vld [vmem:[#allocation2 + $0x188] sm:$0xff]
    %v315 = vld [vmem:[#allocation2 + $0x198] sm:$0xff]
    %v316 = vld [vmem:[#allocation2 + $0x1a0] sm:$0xff]
    %v317 = vld [vmem:[#allocation2 + $0x1b0] sm:$0xff]
    %v318 = vld [vmem:[#allocation2 + $0x1b8] sm:$0xff]
    %v319 = vld [vmem:[#allocation2 + $0x1c8] sm:$0xff]
    %v320 = vld [vmem:[#allocation2 + $0x1d0] sm:$0xff]
    %v321 = vld [vmem:[#allocation2 + $0x1e0] sm:$0xff]
    %v322 = vld [vmem:[#allocation2 + $0x1e8] sm:$0xff]
    %v323 = vld [vmem:[#allocation2 + $0x1f8] sm:$0xff]
    %v324 = vld [vmem:[#allocation2 + $0x200] sm:$0xff]
    %v326 = vsel %vm66, %v308, 0
    %328 = vmatpush.msra.mxu0 0.0
    %329 = vmatpush.msra.mxu0 0.0
    %330 = vmatpush.msra.mxu0 0.0
    %331 = vmatpush.msra.mxu0 0.0
    %332 = vmatpush.msra.mxu0 0.0
    %333 = vmatpush.msra.mxu0 0.0
    %334 = vmatpush.msra.mxu0 0.0
    %335 = vmatpush.msra.mxu0 0.0
    %336 = vmatpush.msra.mxu0 0.0
    %337 = vmatpush.msra.mxu0 0.0
    %338 = vmatpush.msra.mxu0 0.0
    %339 = vmatpush.msra.mxu0 0.0
    %340 = vmatpush.msra.mxu0 %v323
    %341 = vmatpush.msra.mxu0 %v321
    %342 = vmatpush.msra.mxu0 %v319
    %343 = vmatpush.msra.mxu0 %v317
    %344 = vmatmul.f32.gmra.mxu0 %v326
    %v345 = vpop.f32.mrf.mxu0
    %v346 = vadd.f32 0.0, %v345
    %347 = vdwg.mxu0
    %348 = vmatpush.msra.mxu0 0.0
    %349 = vmatpush.msra.mxu0 0.0
    %350 = vmatpush.msra.mxu0 0.0
    %351 = vmatpush.msra.mxu0 0.0
    %352 = vmatpush.msra.mxu0 0.0
    %353 = vmatpush.msra.mxu0 0.0
    %354 = vmatpush.msra.mxu0 0.0
    %355 = vmatpush.msra.mxu0 0.0
    %356 = vmatpush.msra.mxu0 0.0
    %357 = vmatpush.msra.mxu0 0.0
    %358 = vmatpush.msra.mxu0 0.0
    %359 = vmatpush.msra.mxu0 0.0
    %360 = vmatpush.msra.mxu0 %v324
    %361 = vmatpush.msra.mxu0 %v322
    %362 = vmatpush.msra.mxu0 %v320
    %363 = vmatpush.msra.mxu0 %v318
    %364 = vmatmul.f32.gmra.mxu0 %v326
    %v365 = vpop.f32.mrf.mxu0
    %v366 = vadd.f32 0.0, %v365
    %367 = vdwg.mxu0
    %368 = vmatpush.msra.mxu0 0.0
    %369 = vmatpush.msra.mxu0 0.0
    %370 = vmatpush.msra.mxu0 0.0
    %371 = vmatpush.msra.mxu0 0.0
    %372 = vmatpush.msra.mxu0 0.0
    %373 = vmatpush.msra.mxu0 0.0
    %374 = vmatpush.msra.mxu0 0.0
    %375 = vmatpush.msra.mxu0 0.0
    %376 = vmatpush.msra.mxu0 0.0
    %377 = vmatpush.msra.mxu0 0.0
    %378 = vmatpush.msra.mxu0 0.0
    %379 = vmatpush.msra.mxu0 0.0
    %380 = vmatpush.msra.mxu0 %v315
    %381 = vmatpush.msra.mxu0 %v313
    %382 = vmatpush.msra.mxu0 %v311
    %383 = vmatpush.msra.mxu0 %v309
    %384 = vmatmul.f32.gmra.mxu0 %v114
    %v385 = vpop.f32.mrf.mxu0
    %v386 = vadd.f32 %v346, %v385
    %387 = vdwg.mxu0
    %388 = vmatpush.msra.mxu0 0.0
    %389 = vmatpush.msra.mxu0 0.0
    %390 = vmatpush.msra.mxu0 0.0
    %391 = vmatpush.msra.mxu0 0.0
    %392 = vmatpush.msra.mxu0 0.0
    %393 = vmatpush.msra.mxu0 0.0
    %394 = vmatpush.msra.mxu0 0.0
    %395 = vmatpush.msra.mxu0 0.0
    %396 = vmatpush.msra.mxu0 0.0
    %397 = vmatpush.msra.mxu0 0.0
    %398 = vmatpush.msra.mxu0 0.0
    %399 = vmatpush.msra.mxu0 0.0
    %400 = vmatpush.msra.mxu0 %v316
    %401 = vmatpush.msra.mxu0 %v314
    %402 = vmatpush.msra.mxu0 %v312
    %403 = vmatpush.msra.mxu0 %v310
    %404 = vmatmul.f32.gmra.mxu0 %v114
    %v405 = vpop.f32.mrf.mxu0
    %v406 = vadd.f32 %v366, %v405
    %407 = vdwg.mxu0
    %s408 = scalar_lea.vmem [#allocation2], 532
    %v409 = vld [vmem:[%s408] ss:$8 sm:$0x3]
    %v411 = vperm.slane %v409, 0
    %v412 = vperm.slane %v409, 1
    %v415 = vadd.f32 %v386, %v411
    %v416 = vadd.f32 %v406, %v412
    %417 = vmax.xlane.f32.xlu0 %v415
    %v418 = vpop.xlane.xlu0 %417
    %v419 = vsub.f32 %v415, %v418
    %v420 = vmul.f32 %v419, 1.442695
    %v421 = vpow.pop %v420
    %422 = vadd.xlane.f32.xlu0 %v421
    %v423 = vpop.xlane.xlu0 %422
    %v424 = vrcp.pop %v423
    %v425 = vmul.f32 %v423, %v424
    %v426 = vsub.f32 1.0, %v425
    %v427 = vmul.f32 %v424, %v426
    %v428 = vadd.f32 %v424, %v427
    %vm429 = vweird.f32 %v423
    %vm430 = vweird.f32 %v424
    %vm431 = vmor %vm429, %vm430
    %v432 = vsel %vm431, %v424, %v428
    %v433 = vand.u32 2147483647, %v423
    %vm434 = vcmp.eq.f32.partialorder %v433, 8.507059e+37
    %v435 = vand.u32 %v423, 2147483648
    %v436 = vor.u32 1.1754944e-38, %v435
    %v437 = vsel %vm434, %v436, %v432
    %v438 = vmul.f32 %v421, %v437
    %439 = vst [vmem:[%s3] sm:$0xff] %v438
    %440 = vst [vmem:[%s3 + $0x8] sm:$0xff] %v416
    // Predicated region
    $region18: #{forward.1} parent=1 // pred_check
      _
    $region19: #{forward.1} parent=1 // pred_check_branch
      %442 = sbr.rel (0) target = $region21
    $region20: #{forward.1} parent=1 // pred_region
      _
    $region21: #{forward.1} parent=1 // pred_fallthru
      _
    // Predicated region
    $region22: #{forward.1} parent=1 // pred_check
      _
    $region23: #{forward.1} parent=1 // pred_check_branch
      %444 = sbr.rel (0) target = $region25
    $region24: #{forward.1} parent=1 // pred_region
      _
    $region25: #{forward.1} parent=1 // pred_fallthru
      _
    // Predicated region
    $region26: #{forward.1} parent=1 // pred_check
      _
    $region27: #{forward.1} parent=1 // pred_check_branch
      %446 = sbr.rel (0) target = $region29
    $region28: #{forward.1} parent=1 // pred_region
      _
    $region29: #{forward.1} parent=1 // pred_fallthru
      _
    // Predicated region
    $region30: #{forward.1} parent=1 // pred_check
      _
    $region31: #{forward.1} parent=1 // pred_check_branch
      %448 = sbr.rel (0) target = $region33
    $region32: #{forward.1} parent=1 // pred_region
      _
    $region33: #{forward.1} parent=1 // pred_fallthru
      _
    %449 = vsyncpa [#allocation3], 1

</llo_original>
